<compile_context>
chip_gen: v5e
topology: v5e:2x2
jax: 0.10.0
libtpu: 0.0.40
codegen_flags: <defaults>
</compile_context>

<pallas_src>
import jax
import jax.numpy as jnp
from jax.experimental import pallas as pl
from jax.experimental.pallas import tpu as pltpu


def _round_up(a, b):
    return (a + b - 1) // b * b


def _cdiv(a, b):
    return -(-a // b)


# ----------------------------- Pallas kernel ------------------------------

def stainnet_kernel(x_ref, w1_ref, b1_ref, w2_ref, b2_ref, w3_ref, b3_ref,
                    o_ref):
    # x_ref: (1, Cin, TN) channel-major pixel tile (pixels on the lane axis).
    # W1/b1/b2/b3 are f32; W2/W3 are pre-cast bf16.  Wl is (Cout_l, Cin_l),
    # bias is (Cout_l, 1).
    x = x_ref[0]                                   # (Cin, TN) f32
    w1 = w1_ref[...]                               # (Cmid, Cin) f32
    cin = x.shape[0]

    # ---- layer 1: Conv2d(3 -> 32, 1x1) + ReLU, on the VPU in f32 ----------
    # K=3 is too small for the MXU; a 3-term broadcast MAC keeps the vex slot
    # free for layers 2/3 (lane-broadcast of w1 column x sublane-broadcast of
    # the x row), fused with bias add + ReLU.
    h = w1[:, 0:1] * x[0:1, :]                     # (Cmid, TN) f32
    for k in range(1, cin):                        # static, tiny trip count
        h = h + w1[:, k:k+1] * x[k:k+1, :]
    h = jnp.maximum(h + b1_ref[...], 0.0)

    # ---- layer 2: Conv2d(32 -> 32, 1x1) + ReLU, on the MXU -----------------
    h = jnp.dot(w2_ref[...], h.astype(jnp.bfloat16),
                preferred_element_type=jnp.float32)
    h = jnp.maximum(h + b2_ref[...], 0.0)

    # ---- layer 3: Conv2d(32 -> 3, 1x1) (no activation), on the MXU ---------
    y = jnp.dot(w3_ref[...], h.astype(jnp.bfloat16),
                preferred_element_type=jnp.float32)
    o_ref[0] = (y + b3_ref[...]).astype(o_ref.dtype)


# ------------------------------- wrapper -----------------------------------

def stainnet_pallas(x_nchw, params, *, tn=32768):
    """Run StainNet forward. x_nchw: (N, Cin, H, W) float32.

    params = ((W1,b1),(W2,b2),(W3,b3)) with Wl: (co, ci), bl: (co, 1).
    """
    (w1, b1), (w2, b2), (w3, b3) = params
    N, Cin, H, W = x_nchw.shape
    Cmid = w1.shape[0]
    Cout = w3.shape[0]
    P = H * W

    # Channel-major pixel matrix: free reshape, no NCHW<->NHWC transposes.
    x = x_nchw.reshape(N, Cin, P)

    # Lane-dense pixel tile.  For P < 128 use the full (legal) dim; otherwise a
    # multiple of 128 that never exceeds the array (ragged tail is masked by
    # Pallas -- no wrapper-side pad or slice copies).
    if P < 128:
        tn_eff = P
    else:
        tn_eff = min(_round_up(max(tn, 128), 128), (P // 128) * 128)

    # v7x has 2 TensorCores: keep at least 2 parallel grid steps.
    if N * _cdiv(P, tn_eff) < 2 and P >= 256 and tn_eff > 128:
        tn_eff = max(128, _round_up(_cdiv(P, 2), 128))

    grid = (N, _cdiv(P, tn_eff))
    full = lambda n, j: (0, 0)  # small weights/biases: whole array every step

    # Pre-cast the MXU weights once (removes per-step in-kernel casts).
    w2b = w2.astype(jnp.bfloat16)
    w3b = w3.astype(jnp.bfloat16)

    out = pl.pallas_call(
        stainnet_kernel,
        out_shape=jax.ShapeDtypeStruct((N, Cout, P), jnp.float32),
        grid_spec=pltpu.PrefetchScalarGridSpec(
            num_scalar_prefetch=0,
            grid=grid,
            in_specs=[
                pl.BlockSpec((1, Cin, tn_eff), lambda n, j: (n, 0, j)),  # x
                pl.BlockSpec((Cmid, Cin), full),                         # W1 f32
                pl.BlockSpec((Cmid, 1), full),                           # b1
                pl.BlockSpec((Cmid, Cmid), full),                        # W2 bf16
                pl.BlockSpec((Cmid, 1), full),                           # b2
                pl.BlockSpec((Cout, Cmid), full),                        # W3 bf16
                pl.BlockSpec((Cout, 1), full),                           # b3
            ],
            out_specs=pl.BlockSpec((1, Cout, tn_eff), lambda n, j: (n, 0, j)),
        ),
        compiler_params=pltpu.CompilerParams(
            dimension_semantics=("parallel", "parallel")),
    )(x, w1, b1, w2b, b2, w3b, b3)

    return out.reshape(N, Cout, H, W)


# --------------------------- parameter creation ----------------------------

def make_params(key, input_nc=3, output_nc=3, n_channel=32):
    """Deterministic synthetic weights in conv layout: W (co, ci), b (co, 1)."""
    ks = jax.random.split(key, 6)

    def lin(kw, kb, ci, co):
        scale = 1.0 / jnp.sqrt(ci)
        w = jax.random.uniform(kw, (co, ci), jnp.float32, -scale, scale)
        b = jax.random.uniform(kb, (co, 1), jnp.float32, -scale, scale)
        return w, b

    p1 = lin(ks[0], ks[1], input_nc, n_channel)
    p2 = lin(ks[2], ks[3], n_channel, n_channel)
    p3 = lin(ks[4], ks[5], n_channel, output_nc)
    return (p1, p2, p3)


def stainnet_reference(x_nchw, params):
    """Pure-JAX f32 reference (same math as the PyTorch module)."""
    (w1, b1), (w2, b2), (w3, b3) = params
    N, Cin, H, W = x_nchw.shape
    x = x_nchw.reshape(N, Cin, H * W)
    h = jnp.maximum(jnp.einsum('oi,nip->nop', w1, x) + b1[None], 0.0)
    h = jnp.maximum(jnp.einsum('oi,nip->nop', w2, h) + b2[None], 0.0)
    y = jnp.einsum('oi,nip->nop', w3, h) + b3[None]
    return y.reshape(N, -1, H, W)


# --------------------------------- main ------------------------------------

if __name__ == "__main__":
    key = jax.random.PRNGKey(0)
    k_x, k_p, k_x2 = jax.random.split(key, 3)

    # StainNet default: input_nc=3, output_nc=3, n_layer=3, n_channel=32, k=1
    params = make_params(k_p, input_nc=3, output_nc=3, n_channel=32)

    # Exact-tile case: N=2, 3x16x16 -> P=256 pixels per image.
    N, Cin, H, W = 2, 3, 16, 16
    x = jax.random.normal(k_x, (N, Cin, H, W), jnp.float32)
    out = jax.block_until_ready(stainnet_pallas(x, params))
    ref = stainnet_reference(x, params)
    assert out.shape == (N, 3, H, W)
    # Layers 2/3 use bf16 MXU operands (f32 accumulation); layer 1 is exact f32.
    assert jnp.allclose(out, ref, atol=3e-2, rtol=3e-2), \
        float(jnp.max(jnp.abs(out - ref)))

    # Ragged-tail case (no wrapper pad/slice): P=400, TN=256 -> masked last tile.
    x2 = jax.random.normal(k_x2, (1, Cin, 20, 20), jnp.float32)
    out2 = jax.block_until_ready(stainnet_pallas(x2, params, tn=256))
    ref2 = stainnet_reference(x2, params)
    assert out2.shape == (1, 3, 20, 20)
    assert jnp.allclose(out2, ref2, atol=3e-2, rtol=3e-2), \
        float(jnp.max(jnp.abs(out2 - ref2)))

    print("KERNEL_OK")
</pallas_src>

<mosaic_0001>
module attributes {stable_mosaic.version = 11 : i64} {
  func.func @stainnet_kernel(%arg0: i32, %arg1: i32, %arg2: memref<1x3x256xf32, #tpu.memory_space<vmem>>, %arg3: memref<32x3xf32, #tpu.memory_space<vmem>>, %arg4: memref<32x1xf32, #tpu.memory_space<vmem>>, %arg5: memref<32x32xbf16, #tpu.memory_space<vmem>>, %arg6: memref<32x1xf32, #tpu.memory_space<vmem>>, %arg7: memref<3x32xbf16, #tpu.memory_space<vmem>>, %arg8: memref<3x1xf32, #tpu.memory_space<vmem>>, %arg9: memref<1x3x256xf32, #tpu.memory_space<vmem>>) attributes {dimension_semantics = [#tpu.dimension_semantics<parallel>, #tpu.dimension_semantics<parallel>], iteration_bounds = array<i64: 2, 1>, scalar_prefetch = 0 : i64, scratch_operands = 0 : i64, tpu.core_type = #tpu.core_type<tc>, window_params = [{transform_indices = @transform_0, window_bounds = array<i64: 1, 3, 256>}, {pipeline_mode = #tpu.pipeline_mode<synchronous>, transform_indices = @transform_1, window_bounds = array<i64: 32, 3>}, {pipeline_mode = #tpu.pipeline_mode<synchronous>, transform_indices = @transform_2, window_bounds = array<i64: 32, 1>}, {pipeline_mode = #tpu.pipeline_mode<synchronous>, transform_indices = @transform_3, window_bounds = array<i64: 32, 32>}, {pipeline_mode = #tpu.pipeline_mode<synchronous>, transform_indices = @transform_4, window_bounds = array<i64: 32, 1>}, {pipeline_mode = #tpu.pipeline_mode<synchronous>, transform_indices = @transform_5, window_bounds = array<i64: 3, 32>}, {pipeline_mode = #tpu.pipeline_mode<synchronous>, transform_indices = @transform_6, window_bounds = array<i64: 3, 1>}, {transform_indices = @transform_7, window_bounds = array<i64: 1, 3, 256>}]} {
    %c0 = arith.constant 0 : index
    %c0_0 = arith.constant 0 : index
    %c0_1 = arith.constant 0 : index
    %0 = vector.load %arg2[%c0, %c0_0, %c0_1] : memref<1x3x256xf32, #tpu.memory_space<vmem>>, vector<1x3x256xf32>
    %1 = vector.shape_cast %0 : vector<1x3x256xf32> to vector<3x256xf32>
    %c0_2 = arith.constant 0 : index
    %c0_3 = arith.constant 0 : index
    %2 = vector.load %arg3[%c0_2, %c0_3] : memref<32x3xf32, #tpu.memory_space<vmem>>, vector<32x3xf32>
    %3 = vector.extract_strided_slice %2 {offsets = [0, 0], sizes = [32, 1], strides = [1, 1]} : vector<32x3xf32> to vector<32x1xf32>
    %4 = vector.extract_strided_slice %1 {offsets = [0, 0], sizes = [1, 256], strides = [1, 1]} : vector<3x256xf32> to vector<1x256xf32>
    %5 = vector.broadcast %3 : vector<32x1xf32> to vector<32x256xf32>
    %6 = vector.broadcast %4 : vector<1x256xf32> to vector<32x256xf32>
    %7 = arith.mulf %5, %6 : vector<32x256xf32>
    %8 = vector.extract_strided_slice %2 {offsets = [0, 1], sizes = [32, 1], strides = [1, 1]} : vector<32x3xf32> to vector<32x1xf32>
    %9 = vector.extract_strided_slice %1 {offsets = [1, 0], sizes = [1, 256], strides = [1, 1]} : vector<3x256xf32> to vector<1x256xf32>
    %10 = vector.broadcast %8 : vector<32x1xf32> to vector<32x256xf32>
    %11 = vector.broadcast %9 : vector<1x256xf32> to vector<32x256xf32>
    %12 = arith.mulf %10, %11 : vector<32x256xf32>
    %13 = arith.addf %7, %12 : vector<32x256xf32>
    %14 = vector.extract_strided_slice %2 {offsets = [0, 2], sizes = [32, 1], strides = [1, 1]} : vector<32x3xf32> to vector<32x1xf32>
    %15 = vector.extract_strided_slice %1 {offsets = [2, 0], sizes = [1, 256], strides = [1, 1]} : vector<3x256xf32> to vector<1x256xf32>
    %16 = vector.broadcast %14 : vector<32x1xf32> to vector<32x256xf32>
    %17 = vector.broadcast %15 : vector<1x256xf32> to vector<32x256xf32>
    %18 = arith.mulf %16, %17 : vector<32x256xf32>
    %19 = arith.addf %13, %18 : vector<32x256xf32>
    %c0_4 = arith.constant 0 : index
    %c0_5 = arith.constant 0 : index
    %20 = vector.load %arg4[%c0_4, %c0_5] : memref<32x1xf32, #tpu.memory_space<vmem>>, vector<32x1xf32>
    %21 = vector.broadcast %20 : vector<32x1xf32> to vector<32x256xf32>
    %22 = arith.addf %19, %21 : vector<32x256xf32>
    %cst = arith.constant 0.000000e+00 : f32
    %23 = vector.broadcast %cst : f32 to vector<32x256xf32>
    %24 = arith.maximumf %22, %23 : vector<32x256xf32>
    %c0_6 = arith.constant 0 : index
    %c0_7 = arith.constant 0 : index
    %25 = vector.load %arg5[%c0_6, %c0_7] : memref<32x32xbf16, #tpu.memory_space<vmem>>, vector<32x32xbf16>
    %26 = arith.truncf %24 : vector<32x256xf32> to vector<32x256xbf16>
    %cst_8 = arith.constant dense<0.000000e+00> : vector<32x256xf32>
    %27 = tpu.matmul %25, %26, %cst_8 {dimension_numbers = #tpu.dot_dimension_numbers<[1], [0], [0], [1], [0, 0, 1, 1], [], []>} : vector<32x32xbf16>, vector<32x256xbf16>, vector<32x256xf32> -> vector<32x256xf32>
    %c0_9 = arith.constant 0 : index
    %c0_10 = arith.constant 0 : index
    %28 = vector.load %arg6[%c0_9, %c0_10] : memref<32x1xf32, #tpu.memory_space<vmem>>, vector<32x1xf32>
    %29 = vector.broadcast %28 : vector<32x1xf32> to vector<32x256xf32>
    %30 = arith.addf %27, %29 : vector<32x256xf32>
    %cst_11 = arith.constant 0.000000e+00 : f32
    %31 = vector.broadcast %cst_11 : f32 to vector<32x256xf32>
    %32 = arith.maximumf %30, %31 : vector<32x256xf32>
    %c0_12 = arith.constant 0 : index
    %c0_13 = arith.constant 0 : index
    %33 = vector.load %arg7[%c0_12, %c0_13] : memref<3x32xbf16, #tpu.memory_space<vmem>>, vector<3x32xbf16>
    %34 = arith.truncf %32 : vector<32x256xf32> to vector<32x256xbf16>
    %cst_14 = arith.constant dense<0.000000e+00> : vector<3x256xf32>
    %35 = tpu.matmul %33, %34, %cst_14 {dimension_numbers = #tpu.dot_dimension_numbers<[1], [0], [0], [1], [0, 0, 1, 1], [], []>} : vector<3x32xbf16>, vector<32x256xbf16>, vector<3x256xf32> -> vector<3x256xf32>
    %c0_15 = arith.constant 0 : index
    %c0_16 = arith.constant 0 : index
    %36 = vector.load %arg8[%c0_15, %c0_16] : memref<3x1xf32, #tpu.memory_space<vmem>>, vector<3x1xf32>
    %37 = vector.broadcast %36 : vector<3x1xf32> to vector<3x256xf32>
    %38 = arith.addf %35, %37 : vector<3x256xf32>
    %c0_17 = arith.constant 0 : index
    %c0_18 = arith.constant 0 : index
    %c0_19 = arith.constant 0 : index
    %39 = vector.load %arg9[%c0_17, %c0_18, %c0_19] : memref<1x3x256xf32, #tpu.memory_space<vmem>>, vector<1x3x256xf32>
    %40 = vector.shape_cast %39 : vector<1x3x256xf32> to vector<3x256xf32>
    %41 = vector.shape_cast %38 : vector<3x256xf32> to vector<1x3x256xf32>
    tpu.vector_store %arg9[%c0_17, %c0_18, %c0_19], %41 {strides = array<i32>} : memref<1x3x256xf32, #tpu.memory_space<vmem>>, vector<1x3x256xf32>,
    return
  }
  func.func @transform_0(%arg0: i32, %arg1: i32) -> (i32, i32, i32) {
    %c0_i32 = arith.constant 0 : i32
    %c0_i32_0 = arith.constant 0 : i32
    return %arg0, %c0_i32, %arg1 : i32, i32, i32
  }
  func.func @transform_1(%arg0: i32, %arg1: i32) -> (i32, i32) {
    %c0_i32 = arith.constant 0 : i32
    %c0_i32_0 = arith.constant 0 : i32
    %c0_i32_1 = arith.constant 0 : i32
    return %c0_i32, %c0_i32_0 : i32, i32
  }
  func.func @transform_2(%arg0: i32, %arg1: i32) -> (i32, i32) {
    %c0_i32 = arith.constant 0 : i32
    %c0_i32_0 = arith.constant 0 : i32
    %c0_i32_1 = arith.constant 0 : i32
    return %c0_i32, %c0_i32_0 : i32, i32
  }
  func.func @transform_3(%arg0: i32, %arg1: i32) -> (i32, i32) {
    %c0_i32 = arith.constant 0 : i32
    %c0_i32_0 = arith.constant 0 : i32
    %c0_i32_1 = arith.constant 0 : i32
    return %c0_i32, %c0_i32_0 : i32, i32
  }
  func.func @transform_4(%arg0: i32, %arg1: i32) -> (i32, i32) {
    %c0_i32 = arith.constant 0 : i32
    %c0_i32_0 = arith.constant 0 : i32
    %c0_i32_1 = arith.constant 0 : i32
    return %c0_i32, %c0_i32_0 : i32, i32
  }
  func.func @transform_5(%arg0: i32, %arg1: i32) -> (i32, i32) {
    %c0_i32 = arith.constant 0 : i32
    %c0_i32_0 = arith.constant 0 : i32
    %c0_i32_1 = arith.constant 0 : i32
    return %c0_i32, %c0_i32_0 : i32, i32
  }
  func.func @transform_6(%arg0: i32, %arg1: i32) -> (i32, i32) {
    %c0_i32 = arith.constant 0 : i32
    %c0_i32_0 = arith.constant 0 : i32
    %c0_i32_1 = arith.constant 0 : i32
    return %c0_i32, %c0_i32_0 : i32, i32
  }
  func.func @transform_7(%arg0: i32, %arg1: i32) -> (i32, i32, i32) {
    %c0_i32 = arith.constant 0 : i32
    %c0_i32_0 = arith.constant 0 : i32
    return %arg0, %c0_i32, %arg1 : i32, i32, i32
  }
}

</mosaic_0001>

<llo_original>
// kernel: tpu_custom_call.1
$region0: #{tpu_custom_call.1}
  #allocation0 [shape = 'u32[]', space=smem, size = 0x4, offset = 0x4, fixed_abs, tag = 'smem constant byte address 0x4 - core index']
  #allocation1 [shape = 'u32[72,128]{1,0:T(1,128)}', space=vmem, size = 0x9000, scoped, tag = 'internal scratch']
  %s0 = inlined_call_operand.vmem [shape: f32[2,3,256], index: 0, kind: input, shape index: {}]
  %s1 = inlined_call_operand.vmem [shape: f32[32,3], index: 1, kind: input, shape index: {}]
  %s2 = inlined_call_operand.vmem [shape: f32[32,1], index: 2, kind: input, shape index: {}]
  %s3 = inlined_call_operand.vmem [shape: bf16[32,32], index: 3, kind: input, shape index: {}]
  %s4 = inlined_call_operand.vmem [shape: f32[32,1], index: 4, kind: input, shape index: {}]
  %s5 = inlined_call_operand.vmem [shape: bf16[3,32], index: 5, kind: input, shape index: {}]
  %s6 = inlined_call_operand.vmem [shape: f32[3,1], index: 6, kind: input, shape index: {}]
  %s7 = inlined_call_operand.vmem [shape: f32[2,3,256], index: 7, kind: output, shape index: {}]
  %s8 = sld [smem:[#allocation0]]
  $region61: #{tpu_custom_call.1} parent=0
    _
  %s10 = ssub.s32 1, %s8
  %s11 = scalar_select 0, %s10, %s8
  loop: start=0, step=1, limit=4
  $region2: #{tpu_custom_call.1} parent=0 // loop_pre_header
    _
  $region3: #{tpu_custom_call.1} parent=0 // loop_header
    %s13 = sphi 0, %s17
    %p14 = scmp.ge.s32.totalorder %s13, 4
    %s20 = sphi 0, %s32
    %s21 = sphi 0, %s28
    %s22 = sphi 0, %s20
    %s23 = sphi 0, %s21
    %s24 = sphi 0, %s22
    %s25 = sphi 0, %s23
    %s37 = sphi 0, %s39
    %s40 = sphi 0, %s37
    %s41 = sphi 0, %s40
    %s57 = sphi 0, %s41
    %s61 = sphi 0, %s61
    %s63 = sphi 0, %s61
    %s64 = sphi 0, %s63
    %s78 = sphi 0, %s64
    %s82 = sphi 0, %s82
    %s84 = sphi 0, %s82
    %s85 = sphi 0, %s84
    %s99 = sphi 0, %s85
    %s103 = sphi 0, %s103
    %s105 = sphi 0, %s103
    %s106 = sphi 0, %s105
    %s120 = sphi 0, %s106
    %s124 = sphi 0, %s124
    %s126 = sphi 0, %s124
    %s127 = sphi 0, %s126
    %s141 = sphi 0, %s127
    %s145 = sphi 0, %s145
    %s147 = sphi 0, %s145
    %s148 = sphi 0, %s147
    %s162 = sphi 0, %s148
    %s166 = sphi 0, %s166
    %s168 = sphi 0, %s166
    %s169 = sphi 0, %s168
    %s183 = sphi 0, %s169
    %s191 = sphi 0, %s193
    %s194 = sphi 0, %s191
    %s195 = sphi 0, %s194
    %s211 = sphi 0, %s195
  $region4: #{tpu_custom_call.1} parent=0 // loop_header_branch
    %16 = sbr.rel (%p14) target = $region8
  $region5: #{tpu_custom_call.1} parent=0 // loop_body
    %s18 = ssub.s32 %s13, 1
    %s19 = ssub.s32 %s13, 2
    %s26 = sadd.s32 1, %s21
    %p27 = scmp.ge.s32.totalorder %s26, 1
    %s28 = scalar_select %p27, 0, %s26
    %s29 = sadd.s32 1, %s20
    %s30 = scalar_select %p27, %s29, %s20
    %p31 = scmp.ge.s32.totalorder %s30, 2
    %s32 = scalar_select %p31, 0, %s30
    %s33 = ssub.s32 %s20, %s32
    %s34 = ssub.s32 %s21, %s28
    %s35 = sor.u32 %s33, %s34
    %p36 = scmp.eq.s32.totalorder %s35, 0
    %s38 = sadd.s32 %s37, 1
    %s39 = scalar_select %p36, %s37, %s38
    %p42 = pneg %p36
    %p43 = scmp.eq.s32.totalorder %s13, 1
    %p44 = por %p42, %p43
    %p45 = scmp.ne.s32.totalorder %s37, %s40
    %p46 = scmp.eq.s32.totalorder %s13, 0
    %p47 = por %p45, %p46
    %p48 = scmp.ne.s32.totalorder %s37, %s40
    %p49 = scmp.eq.s32.totalorder %s18, 1
    %p50 = por %p48, %p49
    %p51 = scmp.ne.s32.totalorder %s40, %s41
    %p52 = scmp.eq.s32.totalorder %s18, 0
    %p53 = por %p51, %p52
    %p54 = scmp.ne.s32.totalorder %s40, %s41
    %p55 = scmp.eq.s32.totalorder %s19, 1
    %p56 = por %p54, %p55
    %p58 = scmp.ne.s32.totalorder %s41, %s57
    %p59 = scmp.eq.s32.totalorder %s19, 0
    %p60 = por %p58, %p59
    %s62 = sadd.s32 %s61, 1
    %p65 = scmp.eq.s32.totalorder %s13, 1
    %p66 = scmp.ne.s32.totalorder %s61, %s63
    %p67 = scmp.eq.s32.totalorder %s13, 0
    %p68 = por %p66, %p67
    %p69 = scmp.ne.s32.totalorder %s61, %s63
    %p70 = scmp.eq.s32.totalorder %s18, 1
    %p71 = por %p69, %p70
    %p72 = scmp.ne.s32.totalorder %s63, %s64
    %p73 = scmp.eq.s32.totalorder %s18, 0
    %p74 = por %p72, %p73
    %p75 = scmp.ne.s32.totalorder %s63, %s64
    %p76 = scmp.eq.s32.totalorder %s19, 1
    %p77 = por %p75, %p76
    %p79 = scmp.ne.s32.totalorder %s64, %s78
    %p80 = scmp.eq.s32.totalorder %s19, 0
    %p81 = por %p79, %p80
    %s83 = sadd.s32 %s82, 1
    %p86 = scmp.eq.s32.totalorder %s13, 1
    %p87 = scmp.ne.s32.totalorder %s82, %s84
    %p88 = scmp.eq.s32.totalorder %s13, 0
    %p89 = por %p87, %p88
    %p90 = scmp.ne.s32.totalorder %s82, %s84
    %p91 = scmp.eq.s32.totalorder %s18, 1
    %p92 = por %p90, %p91
    %p93 = scmp.ne.s32.totalorder %s84, %s85
    %p94 = scmp.eq.s32.totalorder %s18, 0
    %p95 = por %p93, %p94
    %p96 = scmp.ne.s32.totalorder %s84, %s85
    %p97 = scmp.eq.s32.totalorder %s19, 1
    %p98 = por %p96, %p97
    %p100 = scmp.ne.s32.totalorder %s85, %s99
    %p101 = scmp.eq.s32.totalorder %s19, 0
    %p102 = por %p100, %p101
    %s104 = sadd.s32 %s103, 1
    %p107 = scmp.eq.s32.totalorder %s13, 1
    %p108 = scmp.ne.s32.totalorder %s103, %s105
    %p109 = scmp.eq.s32.totalorder %s13, 0
    %p110 = por %p108, %p109
    %p111 = scmp.ne.s32.totalorder %s103, %s105
    %p112 = scmp.eq.s32.totalorder %s18, 1
    %p113 = por %p111, %p112
    %p114 = scmp.ne.s32.totalorder %s105, %s106
    %p115 = scmp.eq.s32.totalorder %s18, 0
    %p116 = por %p114, %p115
    %p117 = scmp.ne.s32.totalorder %s105, %s106
    %p118 = scmp.eq.s32.totalorder %s19, 1
    %p119 = por %p117, %p118
    %p121 = scmp.ne.s32.totalorder %s106, %s120
    %p122 = scmp.eq.s32.totalorder %s19, 0
    %p123 = por %p121, %p122
    %s125 = sadd.s32 %s124, 1
    %p128 = scmp.eq.s32.totalorder %s13, 1
    %p129 = scmp.ne.s32.totalorder %s124, %s126
    %p130 = scmp.eq.s32.totalorder %s13, 0
    %p131 = por %p129, %p130
    %p132 = scmp.ne.s32.totalorder %s124, %s126
    %p133 = scmp.eq.s32.totalorder %s18, 1
    %p134 = por %p132, %p133
    %p135 = scmp.ne.s32.totalorder %s126, %s127
    %p136 = scmp.eq.s32.totalorder %s18, 0
    %p137 = por %p135, %p136
    %p138 = scmp.ne.s32.totalorder %s126, %s127
    %p139 = scmp.eq.s32.totalorder %s19, 1
    %p140 = por %p138, %p139
    %p142 = scmp.ne.s32.totalorder %s127, %s141
    %p143 = scmp.eq.s32.totalorder %s19, 0
    %p144 = por %p142, %p143
    %s146 = sadd.s32 %s145, 1
    %p149 = scmp.eq.s32.totalorder %s13, 1
    %p150 = scmp.ne.s32.totalorder %s145, %s147
    %p151 = scmp.eq.s32.totalorder %s13, 0
    %p152 = por %p150, %p151
    %p153 = scmp.ne.s32.totalorder %s145, %s147
    %p154 = scmp.eq.s32.totalorder %s18, 1
    %p155 = por %p153, %p154
    %p156 = scmp.ne.s32.totalorder %s147, %s148
    %p157 = scmp.eq.s32.totalorder %s18, 0
    %p158 = por %p156, %p157
    %p159 = scmp.ne.s32.totalorder %s147, %s148
    %p160 = scmp.eq.s32.totalorder %s19, 1
    %p161 = por %p159, %p160
    %p163 = scmp.ne.s32.totalorder %s148, %s162
    %p164 = scmp.eq.s32.totalorder %s19, 0
    %p165 = por %p163, %p164
    %s167 = sadd.s32 %s166, 1
    %p170 = scmp.eq.s32.totalorder %s13, 1
    %p171 = scmp.ne.s32.totalorder %s166, %s168
    %p172 = scmp.eq.s32.totalorder %s13, 0
    %p173 = por %p171, %p172
    %p174 = scmp.ne.s32.totalorder %s166, %s168
    %p175 = scmp.eq.s32.totalorder %s18, 1
    %p176 = por %p174, %p175
    %p177 = scmp.ne.s32.totalorder %s168, %s169
    %p178 = scmp.eq.s32.totalorder %s18, 0
    %p179 = por %p177, %p178
    %p180 = scmp.ne.s32.totalorder %s168, %s169
    %p181 = scmp.eq.s32.totalorder %s19, 1
    %p182 = por %p180, %p181
    %p184 = scmp.ne.s32.totalorder %s169, %s183
    %p185 = scmp.eq.s32.totalorder %s19, 0
    %p186 = por %p184, %p185
    %s187 = ssub.s32 %s20, %s32
    %s188 = ssub.s32 %s21, %s28
    %s189 = sor.u32 %s187, %s188
    %p190 = scmp.eq.s32.totalorder %s189, 0
    %s192 = sadd.s32 %s191, 1
    %s193 = scalar_select %p190, %s191, %s192
    %p196 = pneg %p190
    %p197 = scmp.eq.s32.totalorder %s13, 1
    %p198 = por %p196, %p197
    %p199 = scmp.ne.s32.totalorder %s191, %s194
    %p200 = scmp.eq.s32.totalorder %s13, 0
    %p201 = por %p199, %p200
    %p202 = scmp.ne.s32.totalorder %s191, %s194
    %p203 = scmp.eq.s32.totalorder %s18, 1
    %p204 = por %p202, %p203
    %p205 = scmp.ne.s32.totalorder %s194, %s195
    %p206 = scmp.eq.s32.totalorder %s18, 0
    %p207 = por %p205, %p206
    %p208 = scmp.ne.s32.totalorder %s194, %s195
    %p209 = scmp.eq.s32.totalorder %s19, 1
    %p210 = por %p208, %p209
    %p212 = scmp.ne.s32.totalorder %s195, %s211
    %p213 = scmp.eq.s32.totalorder %s19, 0
    %p214 = por %p212, %p213
    %p215 = scmp.le.s32.totalorder 1, %s13
    %p216 = scmp.lt.s32.totalorder %s13, 3
    %p217 = pnand %p215, %p216
    %p218 = pneg %p217
    // Predicated region
    $region9: #{tpu_custom_call.1} parent=5 // pred_check
      _
    $region10: #{tpu_custom_call.1} parent=5 // pred_check_branch
      %220 = sbr.rel (%p217) target = $region12
    $region11: #{tpu_custom_call.1} parent=5 // pred_region
      %s221 = ssub.s32 %s13, 1
      // Predicated region
      $region13: #{tpu_custom_call.1} parent=11 // pred_check
        %p222 = pneg %p74
      $region14: #{tpu_custom_call.1} parent=11 // pred_check_branch
        %224 = sbr.rel (%p222) target = $region16
      $region15: #{tpu_custom_call.1} parent=11 // pred_region
        _
      $region16: #{tpu_custom_call.1} parent=11 // pred_fallthru
        _
      // Predicated region
      $region17: #{tpu_custom_call.1} parent=11 // pred_check
        %p225 = pneg %p95
      $region18: #{tpu_custom_call.1} parent=11 // pred_check_branch
        %227 = sbr.rel (%p225) target = $region20
      $region19: #{tpu_custom_call.1} parent=11 // pred_region
        _
      $region20: #{tpu_custom_call.1} parent=11 // pred_fallthru
        _
      // Predicated region
      $region21: #{tpu_custom_call.1} parent=11 // pred_check
        %p228 = pneg %p116
      $region22: #{tpu_custom_call.1} parent=11 // pred_check_branch
        %230 = sbr.rel (%p228) target = $region24
      $region23: #{tpu_custom_call.1} parent=11 // pred_region
        _
      $region24: #{tpu_custom_call.1} parent=11 // pred_fallthru
        _
      // Predicated region
      $region25: #{tpu_custom_call.1} parent=11 // pred_check
        %p231 = pneg %p137
      $region26: #{tpu_custom_call.1} parent=11 // pred_check_branch
        %233 = sbr.rel (%p231) target = $region28
      $region27: #{tpu_custom_call.1} parent=11 // pred_region
        _
      $region28: #{tpu_custom_call.1} parent=11 // pred_fallthru
        _
      // Predicated region
      $region29: #{tpu_custom_call.1} parent=11 // pred_check
        %p234 = pneg %p158
      $region30: #{tpu_custom_call.1} parent=11 // pred_check_branch
        %236 = sbr.rel (%p234) target = $region32
      $region31: #{tpu_custom_call.1} parent=11 // pred_region
        _
      $region32: #{tpu_custom_call.1} parent=11 // pred_fallthru
        _
      // Predicated region
      $region33: #{tpu_custom_call.1} parent=11 // pred_check
        %p237 = pneg %p179
      $region34: #{tpu_custom_call.1} parent=11 // pred_check_branch
        %239 = sbr.rel (%p237) target = $region36
      $region35: #{tpu_custom_call.1} parent=11 // pred_region
        _
      $region36: #{tpu_custom_call.1} parent=11 // pred_fallthru
        _
    $region12: #{tpu_custom_call.1} parent=5 // pred_fallthru
      _
    %p240 = scmp.lt.s32.totalorder %s13, 2
    // Predicated region
    $region37: #{tpu_custom_call.1} parent=5 // pred_check
      %p241 = pneg %p240
    $region38: #{tpu_custom_call.1} parent=5 // pred_check_branch
      %243 = sbr.rel (%p241) target = $region40
    $region39: #{tpu_custom_call.1} parent=5 // pred_region
      // Predicated region
      $region41: #{tpu_custom_call.1} parent=39 // pred_check
        %p244 = pneg %p47
      $region42: #{tpu_custom_call.1} parent=39 // pred_check_branch
        %246 = sbr.rel (%p244) target = $region44
      $region43: #{tpu_custom_call.1} parent=39 // pred_region
        %s247 = smul.u32 2, %s21
        %p248 = scmp.lt.s32.totalorder %s20, 1
        %s249 = scalar_select %p248, %s20, 1
        %p250 = scmp.lt.s32.totalorder %s247, 1
        %s251 = scalar_select %p250, %s247, 1
        %s252 = smul.addr %s249, 2
        %s253 = sadd.s32 %s251, %s252
        %s254 = smul.addr %s253, 4
        %s255 = scalar_lea.vmem %s0, %s254
        %s256 = smul.u32 2, %s21
      $region44: #{tpu_custom_call.1} parent=39 // pred_fallthru
        _
    $region40: #{tpu_custom_call.1} parent=5 // pred_fallthru
      _
    %p257 = scmp.le.s32.totalorder 1, %s13
    %p258 = scmp.lt.s32.totalorder %s13, 3
    %p259 = pnand %p257, %p258
    %p260 = pneg %p259
    // Predicated region
    $region45: #{tpu_custom_call.1} parent=5 // pred_check
      _
    $region46: #{tpu_custom_call.1} parent=5 // pred_check_branch
      %262 = sbr.rel (%p259) target = $region48
    $region47: #{tpu_custom_call.1} parent=5 // pred_region
      %s263 = ssub.s32 %s13, 1
      %s264 = smul.u32 2, %s23
      %p265 = scmp.lt.s32.totalorder %s22, 1
      %s266 = scalar_select %p265, %s22, 1
      %p267 = scmp.lt.s32.totalorder %s264, 1
      %s268 = scalar_select %p267, %s264, 1
      %s269 = smul.addr %s266, 2
      %s270 = sadd.s32 %s268, %s269
      %s271 = smul.addr %s270, 4
      %s272 = scalar_lea.vmem %s0, %s271
      %p273 = pneg %p53
      %p274 = pneg %p50
      %p275 = pneg %p74
      %p276 = pneg %p71
      %p277 = pneg %p95
      %p278 = pneg %p92
      %p279 = pneg %p116
      %p280 = pneg %p113
      %p281 = pneg %p137
      %p282 = pneg %p134
      %p283 = pneg %p158
      %p284 = pneg %p155
      %p285 = pneg %p179
      %p286 = pneg %p176
      %p287 = pneg %p207
      %p288 = pneg %p204
      %s289 = smul.u32 2, %s23
      %p290 = scmp.lt.s32.totalorder %s22, 1
      %s291 = scalar_select %p290, %s22, 1
      %p292 = scmp.lt.s32.totalorder %s289, 1
      %s293 = scalar_select %p292, %s289, 1
      %s294 = smul.addr %s291, 2
      %s295 = sadd.s32 %s293, %s294
      %s296 = smul.addr %s295, 4
      %s297 = scalar_lea.vmem %s7, %s296
      %s298 = smul.u32 2, %s23
      %p299 = scmp.lt.s32.totalorder %s22, 1
      %s300 = scalar_select %p299, %s22, 1
      %p301 = scmp.lt.s32.totalorder %s298, 1
      %s302 = scalar_select %p301, %s298, 1
      %s303 = smul.addr %s300, 2
      %s304 = sadd.s32 %s302, %s303
      %s305 = smul.addr %s304, 4
      %s306 = scalar_lea.vmem %s0, %s305
      %s307 = smul.u32 2, %s23
      %s308 = smul.u32 2, %s23
      %p309 = scmp.lt.s32.totalorder %s22, 1
      %s310 = scalar_select %p309, %s22, 1
      %p311 = scmp.lt.s32.totalorder %s308, 1
      %s312 = scalar_select %p311, %s308, 1
      %s313 = smul.addr %s310, 2
      %s314 = sadd.s32 %s312, %s313
      %s315 = smul.addr %s314, 4
      %s316 = scalar_lea.vmem %s7, %s315
      %s317 = smul.u32 2, %s23
      %v319 = vld [vmem:[%s306] sm:$0x77]
      %v320 = vld [vmem:[%s1] sm:$0xff]
      %v321 = vld [vmem:[%s1 + $0x8] sm:$0xff]
      %v322 = vld [vmem:[%s1 + $0x10] sm:$0xff]
      %v323 = vld [vmem:[%s1 + $0x18] sm:$0xff]
      %325 = vset.pattern.permute.xlu0 0
      %326 = vperm.xlu0 %325, %v320
      %v327 = vpop.permute.xlu0 %326
      %330 = vset.pattern.permute.xlu0 0
      %331 = vperm.xlu0 %330, %v321
      %v332 = vpop.permute.xlu0 %331
      %335 = vset.pattern.permute.xlu0 0
      %336 = vperm.xlu0 %335, %v322
      %v337 = vpop.permute.xlu0 %336
      %340 = vset.pattern.permute.xlu0 0
      %341 = vperm.xlu0 %340, %v323
      %v342 = vpop.permute.xlu0 %341
      %v345 = vperm.slane %v319, 0
      %v346 = vperm.slane %v319, 4
      %v349 = vperm.slane %v345, 0
      %v350 = vperm.slane %v346, 0
      %v351 = vmul.f32 %v327, %v349
      %v352 = vmul.f32 %v327, %v350
      %v353 = vmul.f32 %v332, %v349
      %v354 = vmul.f32 %v332, %v350
      %v355 = vmul.f32 %v337, %v349
      %v356 = vmul.f32 %v337, %v350
      %v357 = vmul.f32 %v342, %v349
      %v358 = vmul.f32 %v342, %v350
      %359 = vset.pattern.permute.xlu0 1
      %360 = vperm.xlu0 %359, %v320
      %v361 = vpop.permute.xlu0 %360
      %363 = vset.pattern.permute.xlu0 1
      %364 = vperm.xlu0 %363, %v321
      %v365 = vpop.permute.xlu0 %364
      %367 = vset.pattern.permute.xlu0 1
      %368 = vperm.xlu0 %367, %v322
      %v369 = vpop.permute.xlu0 %368
      %371 = vset.pattern.permute.xlu0 1
      %372 = vperm.xlu0 %371, %v323
      %v373 = vpop.permute.xlu0 %372
      %v375 = vperm.slane %v319, 1
      %v376 = vperm.slane %v319, 5
      %v379 = vperm.slane %v375, 1
      %v380 = vperm.slane %v376, 1
      %v381 = vmul.f32 %v361, %v379
      %v382 = vmul.f32 %v361, %v380
      %v383 = vmul.f32 %v365, %v379
      %v384 = vmul.f32 %v365, %v380
      %v385 = vmul.f32 %v369, %v379
      %v386 = vmul.f32 %v369, %v380
      %v387 = vmul.f32 %v373, %v379
      %v388 = vmul.f32 %v373, %v380
      %v389 = vadd.f32 %v351, %v381
      %v390 = vadd.f32 %v352, %v382
      %v391 = vadd.f32 %v353, %v383
      %v392 = vadd.f32 %v354, %v384
      %v393 = vadd.f32 %v355, %v385
      %v394 = vadd.f32 %v356, %v386
      %v395 = vadd.f32 %v357, %v387
      %v396 = vadd.f32 %v358, %v388
      %397 = vset.pattern.permute.xlu0 2
      %398 = vperm.xlu0 %397, %v320
      %v399 = vpop.permute.xlu0 %398
      %401 = vset.pattern.permute.xlu0 2
      %402 = vperm.xlu0 %401, %v321
      %v403 = vpop.permute.xlu0 %402
      %405 = vset.pattern.permute.xlu0 2
      %406 = vperm.xlu0 %405, %v322
      %v407 = vpop.permute.xlu0 %406
      %409 = vset.pattern.permute.xlu0 2
      %410 = vperm.xlu0 %409, %v323
      %v411 = vpop.permute.xlu0 %410
      %v413 = vperm.slane %v319, 2
      %v414 = vperm.slane %v319, 6
      %v417 = vperm.slane %v413, 2
      %v418 = vperm.slane %v414, 2
      %v419 = vmul.f32 %v399, %v417
      %v420 = vmul.f32 %v399, %v418
      %v421 = vmul.f32 %v403, %v417
      %v422 = vmul.f32 %v403, %v418
      %v423 = vmul.f32 %v407, %v417
      %v424 = vmul.f32 %v407, %v418
      %v425 = vmul.f32 %v411, %v417
      %v426 = vmul.f32 %v411, %v418
      %v427 = vadd.f32 %v389, %v419
      %v428 = vadd.f32 %v390, %v420
      %v429 = vadd.f32 %v391, %v421
      %v430 = vadd.f32 %v392, %v422
      %v431 = vadd.f32 %v393, %v423
      %v432 = vadd.f32 %v394, %v424
      %v433 = vadd.f32 %v395, %v425
      %v434 = vadd.f32 %v396, %v426
      %v435 = vld [vmem:[%s2] sm:$0xff]
      %v436 = vld [vmem:[%s2 + $0x8] sm:$0xff]
      %v437 = vld [vmem:[%s2 + $0x10] sm:$0xff]
      %v438 = vld [vmem:[%s2 + $0x18] sm:$0xff]
      %440 = vset.pattern.permute.xlu0 0
      %441 = vperm.xlu0 %440, %v435
      %v442 = vpop.permute.xlu0 %441
      %445 = vset.pattern.permute.xlu0 0
      %446 = vperm.xlu0 %445, %v436
      %v447 = vpop.permute.xlu0 %446
      %450 = vset.pattern.permute.xlu0 0
      %451 = vperm.xlu0 %450, %v437
      %v452 = vpop.permute.xlu0 %451
      %455 = vset.pattern.permute.xlu0 0
      %456 = vperm.xlu0 %455, %v438
      %v457 = vpop.permute.xlu0 %456
      %v459 = vadd.f32 %v427, %v442
      %v460 = vadd.f32 %v428, %v442
      %v461 = vadd.f32 %v429, %v447
      %v462 = vadd.f32 %v430, %v447
      %v463 = vadd.f32 %v431, %v452
      %v464 = vadd.f32 %v432, %v452
      %v465 = vadd.f32 %v433, %v457
      %v466 = vadd.f32 %v434, %v457
      %v467 = vmax.f32 %v459, 0.0
      %v468 = vmax.f32 %v460, 0.0
      %v469 = vmax.f32 %v461, 0.0
      %v470 = vmax.f32 %v462, 0.0
      %v471 = vmax.f32 %v463, 0.0
      %v472 = vmax.f32 %v464, 0.0
      %v473 = vmax.f32 %v465, 0.0
      %v474 = vmax.f32 %v466, 0.0
      %v475 = vld [vmem:[%s3] sm:$0xf]
      %v476 = vld [vmem:[%s3 + $0x4] sm:$0xf]
      %v477 = vld [vmem:[%s3 + $0x8] sm:$0xf]
      %v478 = vld [vmem:[%s3 + $0xc] sm:$0xf]
      %v479 = vpack.c.bf16 %v469, %v467
      %v480 = vpack.c.bf16 %v470, %v468
      %v481 = vpack.c.bf16 %v473, %v471
      %v482 = vpack.c.bf16 %v474, %v472
      %v483 = vld [vmem:[%s4] sm:$0xff]
      %v484 = vld [vmem:[%s4 + $0x8] sm:$0xff]
      %v485 = vld [vmem:[%s4 + $0x10] sm:$0xff]
      %v486 = vld [vmem:[%s4 + $0x18] sm:$0xff]
      %488 = vset.pattern.permute.xlu0 0
      %489 = vperm.xlu0 %488, %v483
      %v490 = vpop.permute.xlu0 %489
      %493 = vset.pattern.permute.xlu0 0
      %494 = vperm.xlu0 %493, %v484
      %v495 = vpop.permute.xlu0 %494
      %498 = vset.pattern.permute.xlu0 0
      %499 = vperm.xlu0 %498, %v485
      %v500 = vpop.permute.xlu0 %499
      %503 = vset.pattern.permute.xlu0 0
      %504 = vperm.xlu0 %503, %v486
      %v505 = vpop.permute.xlu0 %504
      %v511 = vunpack.c.l.b16 %v475
      %v512 = vunpack.c.l.b16 %v476
      %v513 = vunpack.c.l.b16 %v477
      %v514 = vunpack.c.l.b16 %v478
      %v515 = vpack.c.b16 %v512, %v511
      %v516 = vpack.c.b16 %v514, %v513
      %vm517 = vcmask 261120
      %v519 = vsel %vm517, %v515, 0
      %v522 = vsel %vm517, %v516, 0
      %524 = vmatpush.bf16.msra.mxu0 0
      %525 = vmatpush.bf16.msra.mxu0 0
      %526 = vmatpush.bf16.msra.mxu0 0
      %527 = vmatpush.bf16.msra.mxu0 0
      %528 = vmatpush.bf16.msra.mxu0 0
      %529 = vmatpush.bf16.msra.mxu0 0
      %530 = vmatpush.bf16.msra.mxu0 %v481
      %531 = vmatpush.bf16.msra.mxu0 %v479
      %532 = vmatmul.bf16.gmra.mxu0 %v519
      %v533 = vpop.f32.mrf.mxu0
      %v534 = vadd.f32 %v490, %v533
      %v535 = vpop.f32.mrf.mxu0
      %v536 = vadd.f32 %v495, %v535
      %537 = vmatmul.bf16.gmra.mxu0 %v522
      %v538 = vpop.f32.mrf.mxu0
      %v539 = vadd.f32 %v500, %v538
      %v540 = vpop.f32.mrf.mxu0
      %v541 = vadd.f32 %v505, %v540
      %542 = vdwg.mxu0
      %543 = vmatpush.bf16.msra.mxu0 0
      %544 = vmatpush.bf16.msra.mxu0 0
      %545 = vmatpush.bf16.msra.mxu0 0
      %546 = vmatpush.bf16.msra.mxu0 0
      %547 = vmatpush.bf16.msra.mxu0 0
      %548 = vmatpush.bf16.msra.mxu0 0
      %549 = vmatpush.bf16.msra.mxu0 %v482
      %550 = vmatpush.bf16.msra.mxu0 %v480
      %551 = vmatmul.bf16.gmra.mxu0 %v519
      %v552 = vpop.f32.mrf.mxu0
      %v553 = vadd.f32 %v490, %v552
      %v554 = vpop.f32.mrf.mxu0
      %v555 = vadd.f32 %v495, %v554
      %556 = vmatmul.bf16.gmra.mxu0 %v522
      %v557 = vpop.f32.mrf.mxu0
      %v558 = vadd.f32 %v500, %v557
      %v559 = vpop.f32.mrf.mxu0
      %v560 = vadd.f32 %v505, %v559
      %561 = vdwg.mxu0
      %v562 = vmax.f32 %v534, 0.0
      %v563 = vmax.f32 %v553, 0.0
      %v564 = vmax.f32 %v536, 0.0
      %v565 = vmax.f32 %v555, 0.0
      %v566 = vmax.f32 %v539, 0.0
      %v567 = vmax.f32 %v558, 0.0
      %v568 = vmax.f32 %v541, 0.0
      %v569 = vmax.f32 %v560, 0.0
      %v570 = vld [vmem:[%s5] sm:$0x3]
      %v571 = vpack.c.bf16 %v564, %v562
      %v572 = vpack.c.bf16 %v565, %v563
      %v573 = vpack.c.bf16 %v568, %v566
      %v574 = vpack.c.bf16 %v569, %v567
      %v575 = vld [vmem:[%s6] sm:$0x7]
      %577 = vset.pattern.permute.xlu0 0
      %578 = vperm.xlu0 %577, %v575
      %v579 = vpop.permute.xlu0 %578
      %v582 = vsel %vm517, %v570, 0
      %584 = vmatpush.bf16.msra.mxu0 0
      %585 = vmatpush.bf16.msra.mxu0 0
      %586 = vmatpush.bf16.msra.mxu0 0
      %587 = vmatpush.bf16.msra.mxu0 0
      %588 = vmatpush.bf16.msra.mxu0 0
      %589 = vmatpush.bf16.msra.mxu0 0
      %590 = vmatpush.bf16.msra.mxu0 %v573
      %591 = vmatpush.bf16.msra.mxu0 %v571
      %592 = vmatmul.bf16.gmra.mxu0 %v582
      %v593 = vpop.f32.mrf.mxu0
      %v594 = vadd.f32 %v579, %v593
      %v595 = vpop.f32.mrf.mxu0
      %596 = vdwg.mxu0
      %597 = vmatpush.bf16.msra.mxu0 0
      %598 = vmatpush.bf16.msra.mxu0 0
      %599 = vmatpush.bf16.msra.mxu0 0
      %600 = vmatpush.bf16.msra.mxu0 0
      %601 = vmatpush.bf16.msra.mxu0 0
      %602 = vmatpush.bf16.msra.mxu0 0
      %603 = vmatpush.bf16.msra.mxu0 %v574
      %604 = vmatpush.bf16.msra.mxu0 %v572
      %605 = vmatmul.bf16.gmra.mxu0 %v582
      %v606 = vpop.f32.mrf.mxu0
      %v607 = vadd.f32 %v579, %v606
      %v608 = vpop.f32.mrf.mxu0
      %609 = vdwg.mxu0
      %v612 = vrot.slane %v607, 4
      %vm613 = vcmask 1043456
      %v614 = vsel %vm613, %v594, %v612
      %616 = vst [vmem:[%s316] sm:$0x77] %v614
      %s617 = smul.u32 2, %s23
      %p618 = scmp.lt.s32.totalorder %s22, 1
      %s619 = scalar_select %p618, %s22, 1
      %p620 = scmp.lt.s32.totalorder %s617, 1
      %s621 = scalar_select %p620, %s617, 1
      %s622 = smul.addr %s619, 2
      %s623 = sadd.s32 %s621, %s622
      %s624 = smul.addr %s623, 4
      %s625 = scalar_lea.vmem %s7, %s624
      // Predicated region
      $region49: #{tpu_custom_call.1} parent=47 // pred_check
        %p626 = pneg %p204
      $region50: #{tpu_custom_call.1} parent=47 // pred_check_branch
        %628 = sbr.rel (%p626) target = $region52
      $region51: #{tpu_custom_call.1} parent=47 // pred_region
        %s629 = smul.u32 2, %s23
      $region52: #{tpu_custom_call.1} parent=47 // pred_fallthru
        _
    $region48: #{tpu_custom_call.1} parent=5 // pred_fallthru
      _
    %p630 = scmp.le.s32.totalorder 2, %s13
    // Predicated region
    $region53: #{tpu_custom_call.1} parent=5 // pred_check
      %p631 = pneg %p630
    $region54: #{tpu_custom_call.1} parent=5 // pred_check_branch
      %633 = sbr.rel (%p631) target = $region56
    $region55: #{tpu_custom_call.1} parent=5 // pred_region
      %s634 = ssub.s32 %s13, 2
      // Predicated region
      $region57: #{tpu_custom_call.1} parent=55 // pred_check
        %p635 = pneg %p210
      $region58: #{tpu_custom_call.1} parent=55 // pred_check_branch
        %637 = sbr.rel (%p635) target = $region60
      $region59: #{tpu_custom_call.1} parent=55 // pred_region
        %s638 = smul.u32 2, %s25
        %p639 = scmp.lt.s32.totalorder %s24, 1
        %s640 = scalar_select %p639, %s24, 1
        %p641 = scmp.lt.s32.totalorder %s638, 1
        %s642 = scalar_select %p641, %s638, 1
        %s643 = smul.addr %s640, 2
        %s644 = sadd.s32 %s642, %s643
        %s645 = smul.addr %s644, 4
        %s646 = scalar_lea.vmem %s7, %s645
      $region60: #{tpu_custom_call.1} parent=55 // pred_fallthru
        _
    $region56: #{tpu_custom_call.1} parent=5 // pred_fallthru
      _
  $region6: #{tpu_custom_call.1} parent=0 // loop_footer
    %s17 = sadd.s32 1, %s13
  $region7: #{tpu_custom_call.1} parent=0 // loop_footer_branch
    %12 = sbr.rel target = $region3
  $region8: #{tpu_custom_call.1} parent=0 // loop_exit
    _

</llo_original>
